<compile_context>
chip_gen: v6e
topology: v6e:2x2x1
jax: 0.10.0
libtpu: 0.0.40
codegen_flags: <defaults>
</compile_context>

<pallas_src>
from functools import partial

import jax
import jax.numpy as jnp
from jax.experimental import pallas as pl
from jax.experimental.pallas import tpu as pltpu


def _round_up(n: int, m: int) -> int:
    return ((n + m - 1) // m) * m


def _sublane_pack(dtype) -> int:
    # native sublane packing: 8 rows for 4-byte dtypes, 16 for 2-byte, 32 for 1-byte
    return 8 * max(1, 4 // jnp.dtype(dtype).itemsize)


def _choose_spatial_tile(hw: int, c: int, itemsize: int, chunk: int) -> int:
    # Pass-1 VMEM bytes per spatial element:
    #   double-buffered x input rows + f32 cast temp + two deferred
    #   (chunk, t_s) f32 accumulators + double-buffered (2, t_s) f32 output.
    per_elem = 2 * c * itemsize + 4 * chunk + 2 * 4 * chunk + 2 * 2 * 4
    budget = 12 * 1024 * 1024          # stays under the 16 MiB v5e scoped default
    cap = max(128, (budget // per_elem) // 128 * 128)   # multiple of 128
    return hw if hw <= cap else cap


# ---------------------------------------------------------------------------
# Pass 1: fused channel max + mean over the flattened spatial dim.
# ---------------------------------------------------------------------------
def _channel_reduce_kernel(x_ref, planes_ref, *, inv_c, chunk, n_full, rem):
    # Deferred cross-sublane reduce: full-chunk-shaped partials (VALU max/add
    # per chunk), a single XLU reduce to (1, t_s) at the end of the tile.
    if n_full > 0:
        x0 = x_ref[0:chunk, :].astype(jnp.float32)
        acc_mx = x0
        acc_sm = x0
        for i in range(1, n_full):
            xc = x_ref[i * chunk:(i + 1) * chunk, :].astype(jnp.float32)
            acc_mx = jnp.maximum(acc_mx, xc)
            acc_sm = acc_sm + xc
        mx = jnp.max(acc_mx, axis=0, keepdims=True)
        sm = jnp.sum(acc_sm, axis=0, keepdims=True)
        if rem > 0:
            xr = x_ref[n_full * chunk:n_full * chunk + rem, :].astype(jnp.float32)
            mx = jnp.maximum(mx, jnp.max(xr, axis=0, keepdims=True))
            sm = sm + jnp.sum(xr, axis=0, keepdims=True)
    else:
        xr = x_ref[0:rem, :].astype(jnp.float32)
        mx = jnp.max(xr, axis=0, keepdims=True)
        sm = jnp.sum(xr, axis=0, keepdims=True)
    # single (2, t_s) store instead of two 1-sublane masked stores
    planes_ref[...] = jnp.concatenate([mx, sm * inv_c], axis=0)


# ---------------------------------------------------------------------------
# Pass 2: 2 -> 1 KxK "same" convolution + sigmoid (column taps on the MXU).
# ---------------------------------------------------------------------------
def _spatial_conv_kernel(p_ref, band_ref, o_ref, pad_ref, *, K, pad, off, H, W):
    Wp = pad_ref.shape[-1]
    # Zero only the 2*pad halo rows (lane-dense stores); the plane interior is
    # stored at (row=off, col=0) so the bulk store is sublane- and lane-aligned.
    # Columns [W, Wp) of interior rows are never read (all matmul LHS slices
    # use columns 0:W), so they don't need zeroing.
    pad_ref[:, off - pad:off, :] = jnp.zeros((2, pad, Wp), jnp.float32)
    pad_ref[:, off + H:off + H + pad, :] = jnp.zeros((2, pad, Wp), jnp.float32)
    pad_ref[:, off:off + H, 0:W] = p_ref[...]

    # Column (kj) taps as MXU matmuls against banded (W, W) weight matrices;
    # only the K static row (sublane) shifts remain on the load side.
    acc = jnp.zeros((H, W), jnp.float32)
    for p in range(2):
        for ki in range(K):
            r0 = off + ki - pad
            acc = acc + jnp.dot(pad_ref[p, r0:r0 + H, 0:W],
                                band_ref[p * K + ki],
                                preferred_element_type=jnp.float32,
                                precision=jax.lax.Precision.HIGHEST)

    o_ref[0] = jax.nn.sigmoid(acc).astype(o_ref.dtype)


def spatial_attention(x, weight, *, kernel_size=7):
    """x: (N, C, H, W); weight: (2, K, K) = Conv2d(2, 1, K, bias=False) weight squeezed."""
    N, C, H, W = x.shape
    K = kernel_size
    pad = 3 if K == 7 else 1          # matches the module's padding rule
    HW = H * W

    # ---- pass 1: channel max / mean, lane-dense over flattened H*W ----------
    x_flat = x.reshape(N, C, HW)                  # free, contiguous reshape
    chunk = _sublane_pack(x.dtype)                # 8 f32 / 16 bf16 / 32 int8
    n_full, rem = C // chunk, C % chunk
    t_s = _choose_spatial_tile(HW, C, x.dtype.itemsize, chunk)
    if N * pl.cdiv(HW, t_s) < 2 and HW >= 256:    # feed both v7x TCs at batch 1
        t_s = _round_up(pl.cdiv(HW, 2), 128)
    n_s = pl.cdiv(HW, t_s)
    # NOTE: a trailing partial tile (HW % t_s != 0) reads OOB lanes; the reduce
    # is strictly per-lane, so garbage lanes only feed discarded output lanes.

    planes = pl.pallas_call(
        partial(_channel_reduce_kernel, inv_c=1.0 / C, chunk=chunk,
                n_full=n_full, rem=rem),
        out_shape=jax.ShapeDtypeStruct((N, 2, HW), jnp.float32),
        grid=(N, n_s),
        in_specs=[pl.BlockSpec((pl.Squeezed(), C, t_s), lambda n, s: (n, 0, s))],
        out_specs=pl.BlockSpec((pl.Squeezed(), 2, t_s), lambda n, s: (n, 0, s)),
        compiler_params=pltpu.CompilerParams(
            dimension_semantics=("parallel", "parallel"),
            vmem_limit_bytes=32 * 1024 * 1024),
    )(x_flat)
    # TODO(synk): when (C, HW) fits one pass-1 tile, fuse the conv into pass 1
    # to skip the intermediate HBM round trip (~4/C of the x-read traffic).

    # ---- pass 2: 2 -> 1 KxK conv + sigmoid -----------------------------------
    planes_2d = planes.reshape(N, 2, H, W)        # free reshape
    off = _round_up(pad, 8)                       # sublane-aligned interior row
    Hp = _round_up(off + H + pad, 8)
    Wp = _round_up(W, 128)

    # Banded column-tap weights: band[p*K+ki, c, w] = weight[p, ki, c - w + pad]
    # when that tap is in range; the "same" column zero-padding is folded in.
    c_idx = jnp.arange(W)[:, None]
    w_idx = jnp.arange(W)[None, :]
    kj = c_idx - w_idx + pad
    valid = (kj >= 0) & (kj < K)
    band = jnp.where(valid[None, None],
                     weight.astype(jnp.float32)[:, :, jnp.clip(kj, 0, K - 1)],
                     0.0).reshape(2 * K, W, W)

    # TODO(synk): for very large H (BEV grids) tile pass 2 over H with a
    # 2*pad-row halo so batch-1 conv work also splits across both v7x TCs.
    out = pl.pallas_call(
        partial(_spatial_conv_kernel, K=K, pad=pad, off=off, H=H, W=W),
        out_shape=jax.ShapeDtypeStruct((N, 1, H, W), x.dtype),
        grid=(N,),
        in_specs=[
            pl.BlockSpec((pl.Squeezed(), 2, H, W), lambda n: (n, 0, 0, 0)),  # planes
            pl.BlockSpec((2 * K, W, W), lambda n: (0, 0, 0)),                # banded weights
        ],
        out_specs=pl.BlockSpec((pl.Squeezed(), 1, H, W), lambda n: (n, 0, 0, 0)),
        scratch_shapes=[pltpu.VMEM((2, Hp, Wp), jnp.float32)],
        compiler_params=pltpu.CompilerParams(dimension_semantics=("parallel",)),
    )(planes_2d, band)
    return out


if __name__ == "__main__":
    key = jax.random.PRNGKey(0)
    kx, kw = jax.random.split(key)

    # model_cfg.kernel_size == 7  -> padding 3
    N, C, H, W = 2, 4, 16, 16
    K = 7

    x = jax.random.normal(kx, (N, C, H, W), dtype=jnp.float32)

    # deterministic "kaiming-uniform"-style init for Conv2d(2, 1, K, K, bias=False)
    fan_in = 2 * K * K
    bound = 1.0 / (fan_in ** 0.5)
    weight = jax.random.uniform(kw, (1, 2, K, K), jnp.float32, -bound, bound)

    out = spatial_attention(x, weight[0], kernel_size=K)
    out = jax.block_until_ready(out)

    # pure-JAX reference (same semantics as the PyTorch module)
    max_x = jnp.max(x, axis=1, keepdims=True)
    avg_x = jnp.mean(x, axis=1, keepdims=True)
    cat = jnp.concatenate([max_x, avg_x], axis=1)
    ref = jax.lax.conv_general_dilated(
        cat, weight, window_strides=(1, 1), padding=[(3, 3), (3, 3)],
        dimension_numbers=("NCHW", "OIHW", "NCHW"),
        precision=jax.lax.Precision.HIGHEST)
    ref = jax.nn.sigmoid(ref)

    assert out.shape == (N, 1, H, W)
    assert jnp.allclose(out, ref, atol=1e-4, rtol=1e-4)
    print("KERNEL_OK")
</pallas_src>

<mosaic_0001>
module attributes {stable_mosaic.version = 11 : i64} {
  func.func @_channel_reduce_kernel(%arg0: i32, %arg1: i32, %arg2: memref<1x4x256xf32, #tpu.memory_space<vmem>>, %arg3: memref<1x2x256xf32, #tpu.memory_space<vmem>>) attributes {dimension_semantics = [#tpu.dimension_semantics<parallel>, #tpu.dimension_semantics<parallel>], iteration_bounds = array<i64: 2, 1>, scalar_prefetch = 0 : i64, scratch_operands = 0 : i64, tpu.core_type = #tpu.core_type<tc>, window_params = [{transform_indices = @transform_0, window_bounds = array<i64: 1, 4, 256>}, {transform_indices = @transform_1, window_bounds = array<i64: 1, 2, 256>}]} {
    %c0 = arith.constant 0 : index
    %c0_0 = arith.constant 0 : index
    %c0_1 = arith.constant 0 : index
    %0 = vector.load %arg2[%c0, %c0_0, %c0_1] : memref<1x4x256xf32, #tpu.memory_space<vmem>>, vector<1x4x256xf32>
    %1 = vector.shape_cast %0 : vector<1x4x256xf32> to vector<4x256xf32>
    %cst = arith.constant dense<0xFF800000> : vector<256xf32>
    %2 = vector.multi_reduction <maximumf>, %1, %cst [0] : vector<4x256xf32> to vector<256xf32>
    %3 = vector.shape_cast %2 : vector<256xf32> to vector<1x256xf32>
    %cst_2 = arith.constant dense<0.000000e+00> : vector<256xf32>
    %4 = vector.multi_reduction <add>, %1, %cst_2 [0] : vector<4x256xf32> to vector<256xf32>
    %5 = vector.shape_cast %4 : vector<256xf32> to vector<1x256xf32>
    %cst_3 = arith.constant 2.500000e-01 : f32
    %6 = vector.broadcast %cst_3 : f32 to vector<1x256xf32>
    %7 = arith.mulf %5, %6 : vector<1x256xf32>
    %8 = tpu.concatenate %3, %7 in 0 : vector<1x256xf32>, vector<1x256xf32> -> vector<2x256xf32>
    %c0_4 = arith.constant 0 : index
    %c0_5 = arith.constant 0 : index
    %c0_6 = arith.constant 0 : index
    %9 = vector.load %arg3[%c0_4, %c0_5, %c0_6] : memref<1x2x256xf32, #tpu.memory_space<vmem>>, vector<1x2x256xf32>
    %10 = vector.shape_cast %9 : vector<1x2x256xf32> to vector<2x256xf32>
    %11 = vector.shape_cast %8 : vector<2x256xf32> to vector<1x2x256xf32>
    tpu.vector_store %arg3[%c0_4, %c0_5, %c0_6], %11 {strides = array<i32>} : memref<1x2x256xf32, #tpu.memory_space<vmem>>, vector<1x2x256xf32>,
    return
  }
  func.func @transform_0(%arg0: i32, %arg1: i32) -> (i32, i32, i32) {
    %c0_i32 = arith.constant 0 : i32
    %c0_i32_0 = arith.constant 0 : i32
    return %arg0, %c0_i32, %arg1 : i32, i32, i32
  }
  func.func @transform_1(%arg0: i32, %arg1: i32) -> (i32, i32, i32) {
    %c0_i32 = arith.constant 0 : i32
    %c0_i32_0 = arith.constant 0 : i32
    return %arg0, %c0_i32, %arg1 : i32, i32, i32
  }
}

</mosaic_0001>

<llo_original>
// kernel: tpu_custom_call.1
$region0: #{tpu_custom_call.1}
  #allocation0 [shape = 'u32[]', space=smem, size = 0x4, offset = 0x4, fixed_abs, tag = 'smem constant byte address 0x4 - core index']
  #allocation1 [shape = 'u32[144,128]{1,0:T(1,128)}', space=vmem, size = 0x12000, scoped, tag = 'internal scratch']
  %s0 = inlined_call_operand.hbm [shape: f32[2,4,256], index: 0, kind: input, shape index: {}]
  %s1 = inlined_call_operand.hbm [shape: f32[2,2,256], index: 1, kind: output, shape index: {}]
  %s2 = sld [smem:[#allocation0]]
  $region41: #{tpu_custom_call.1} parent=0
    _
  %s4 = ssub.s32 1, %s2
  %s5 = scalar_select 0, %s4, %s2
  $region1: #{tpu_custom_call.1} parent=0
    #allocation2 [shape = 'u8[8192]{0}', space=vmem, size = 0x2000, scoped, tag = 'input window, operand 0']
    #allocation3 [shape = 's32[2]{0}', space=sflag, size = 0x8, scoped, tag = 'scoped memory for tpu_custom_call.1']
    #allocation4 [shape = 's32[2]{0}', space=sflag, size = 0x8, scoped, tag = 'scoped memory for tpu_custom_call.1']
    #allocation5 [shape = 'u8[4096]{0}', space=vmem, size = 0x1000, scoped, tag = 'output window, operand 0']
    %6 = vsyncpa [#allocation3], 0
    %s7 = scalar_lea.sflag [#allocation3], 1
    %8 = vsyncpa %s7, 0
    %9 = vsyncpa [#allocation4], 0
    %s10 = scalar_lea.sflag [#allocation4], 1
    %11 = vsyncpa %s10, 0
    loop: start=0, step=1, limit=4
    $region2: #{tpu_custom_call.1} parent=1 // loop_pre_header
      _
    $region3: #{tpu_custom_call.1} parent=1 // loop_header
      %s13 = sphi 0, %s17
      %p14 = scmp.ge.s32.totalorder %s13, 4
      %s20 = sphi 0, %s32
      %s21 = sphi 0, %s28
      %s22 = sphi 0, %s20
      %s23 = sphi 0, %s21
      %s24 = sphi 0, %s22
      %s25 = sphi 0, %s23
      %s37 = sphi 0, %s39
      %s40 = sphi 0, %s37
      %s41 = sphi 0, %s40
      %s57 = sphi 0, %s41
      %s65 = sphi 0, %s67
      %s68 = sphi 0, %s65
      %s69 = sphi 0, %s68
      %s85 = sphi 0, %s69
    $region4: #{tpu_custom_call.1} parent=1 // loop_header_branch
      %16 = sbr.rel (%p14) target = $region8
    $region5: #{tpu_custom_call.1} parent=1 // loop_body
      %s18 = ssub.s32 %s13, 1
      %s19 = ssub.s32 %s13, 2
      %s26 = sadd.s32 1, %s21
      %p27 = scmp.ge.s32.totalorder %s26, 1
      %s28 = scalar_select %p27, 0, %s26
      %s29 = sadd.s32 1, %s20
      %s30 = scalar_select %p27, %s29, %s20
      %p31 = scmp.ge.s32.totalorder %s30, 2
      %s32 = scalar_select %p31, 0, %s30
      %s33 = ssub.s32 %s20, %s32
      %s34 = ssub.s32 %s21, %s28
      %s35 = sor.u32 %s33, %s34
      %p36 = scmp.eq.s32.totalorder %s35, 0
      %s38 = sadd.s32 %s37, 1
      %s39 = scalar_select %p36, %s37, %s38
      %p42 = pneg %p36
      %p43 = scmp.eq.s32.totalorder %s13, 1
      %p44 = por %p42, %p43
      %p45 = scmp.ne.s32.totalorder %s37, %s40
      %p46 = scmp.eq.s32.totalorder %s13, 0
      %p47 = por %p45, %p46
      %p48 = scmp.ne.s32.totalorder %s37, %s40
      %p49 = scmp.eq.s32.totalorder %s18, 1
      %p50 = por %p48, %p49
      %p51 = scmp.ne.s32.totalorder %s40, %s41
      %p52 = scmp.eq.s32.totalorder %s18, 0
      %p53 = por %p51, %p52
      %p54 = scmp.ne.s32.totalorder %s40, %s41
      %p55 = scmp.eq.s32.totalorder %s19, 1
      %p56 = por %p54, %p55
      %p58 = scmp.ne.s32.totalorder %s41, %s57
      %p59 = scmp.eq.s32.totalorder %s19, 0
      %p60 = por %p58, %p59
      %s61 = ssub.s32 %s20, %s32
      %s62 = ssub.s32 %s21, %s28
      %s63 = sor.u32 %s61, %s62
      %p64 = scmp.eq.s32.totalorder %s63, 0
      %s66 = sadd.s32 %s65, 1
      %s67 = scalar_select %p64, %s65, %s66
      %p70 = pneg %p64
      %p71 = scmp.eq.s32.totalorder %s13, 1
      %p72 = por %p70, %p71
      %p73 = scmp.ne.s32.totalorder %s65, %s68
      %p74 = scmp.eq.s32.totalorder %s13, 0
      %p75 = por %p73, %p74
      %p76 = scmp.ne.s32.totalorder %s65, %s68
      %p77 = scmp.eq.s32.totalorder %s18, 1
      %p78 = por %p76, %p77
      %p79 = scmp.ne.s32.totalorder %s68, %s69
      %p80 = scmp.eq.s32.totalorder %s18, 0
      %p81 = por %p79, %p80
      %p82 = scmp.ne.s32.totalorder %s68, %s69
      %p83 = scmp.eq.s32.totalorder %s19, 1
      %p84 = por %p82, %p83
      %p86 = scmp.ne.s32.totalorder %s69, %s85
      %p87 = scmp.eq.s32.totalorder %s19, 0
      %p88 = por %p86, %p87
      %p89 = scmp.le.s32.totalorder 1, %s13
      %p90 = scmp.lt.s32.totalorder %s13, 3
      %p91 = pnand %p89, %p90
      %p92 = pneg %p91
      // Predicated region
      $region9: #{tpu_custom_call.1} parent=5 // pred_check
        _
      $region10: #{tpu_custom_call.1} parent=5 // pred_check_branch
        %94 = sbr.rel (%p91) target = $region12
      $region11: #{tpu_custom_call.1} parent=5 // pred_region
        %s95 = ssub.s32 %s13, 1
      $region12: #{tpu_custom_call.1} parent=5 // pred_fallthru
        _
      %p96 = scmp.lt.s32.totalorder %s13, 2
      // Predicated region
      $region13: #{tpu_custom_call.1} parent=5 // pred_check
        %p97 = pneg %p96
      $region14: #{tpu_custom_call.1} parent=5 // pred_check_branch
        %99 = sbr.rel (%p97) target = $region16
      $region15: #{tpu_custom_call.1} parent=5 // pred_region
        // Predicated region
        $region17: #{tpu_custom_call.1} parent=15 // pred_check
          %p100 = pneg %p47
        $region18: #{tpu_custom_call.1} parent=15 // pred_check_branch
          %102 = sbr.rel (%p100) target = $region20
        $region19: #{tpu_custom_call.1} parent=15 // pred_region
          %s103 = sand.u32 %s37, 1
          %s104 = scalar_lea.sflag [#allocation3], %s103
          %s105 = sand.u32 %s37, 1
          %s106 = smul.addr %s105, 8
          %s107 = scalar_lea.vmem [#allocation2], %s106
          %s108 = smul.u32 2, %s21
          %s110 = ssub.s32 128, 128
          %111 = vsyncadd %s104, %s110
          %s112 = smul.addr %s20, 2
          %s113 = sadd.s32 %s108, %s112
          %s114 = smul.addr %s113, 64
          %s115 = scalar_lea.hbm %s0, %s114
          %s117 = sshll.u32 %s107, 4
          %s118 = int_to_ptr.vmem [resolvable:$true] %s117
          %120 = dma.hbm_to_vmem [thread:$0]  %s115, 128, %s118, %s104
        $region20: #{tpu_custom_call.1} parent=15 // pred_fallthru
          _
      $region16: #{tpu_custom_call.1} parent=5 // pred_fallthru
        _
      %p121 = scmp.le.s32.totalorder 1, %s13
      %p122 = scmp.lt.s32.totalorder %s13, 3
      %p123 = pnand %p121, %p122
      %p124 = pneg %p123
      // Predicated region
      $region21: #{tpu_custom_call.1} parent=5 // pred_check
        _
      $region22: #{tpu_custom_call.1} parent=5 // pred_check_branch
        %126 = sbr.rel (%p123) target = $region24
      $region23: #{tpu_custom_call.1} parent=5 // pred_region
        %s127 = ssub.s32 %s13, 1
        %s128 = sand.u32 %s40, 1
        %s129 = scalar_lea.sflag [#allocation3], %s128
        %s130 = sand.u32 %s40, 1
        %s131 = smul.addr %s130, 8
        %s132 = scalar_lea.vmem [#allocation2], %s131
        // Predicated region
        $region25: #{tpu_custom_call.1} parent=23 // pred_check
          %p133 = pneg %p53
        $region26: #{tpu_custom_call.1} parent=23 // pred_check_branch
          %135 = sbr.rel (%p133) target = $region28
        $region27: #{tpu_custom_call.1} parent=23 // pred_region
          %136 = dma.done %s129, 128
        $region28: #{tpu_custom_call.1} parent=23 // pred_fallthru
          _
        %s137 = sand.u32 %s40, 1
        %s138 = scalar_lea.sflag [#allocation3], %s137
        %s139 = sand.u32 %s40, 1
        %s140 = smul.addr %s139, 8
        %s141 = scalar_lea.vmem [#allocation2], %s140
        %p142 = pneg %p53
        %p143 = pneg %p50
        %p144 = pneg %p81
        %p145 = pneg %p78
        %s146 = sand.u32 %s68, 1
        %s147 = scalar_lea.sflag [#allocation4], %s146
        %s148 = sand.u32 %s68, 1
        %s149 = smul.addr %s148, 4
        %s150 = scalar_lea.vmem [#allocation5], %s149
        %s151 = smul.u32 2, %s23
        %s152 = smul.u32 2, %s23
        %v153 = vld [vmem:[%s132] sm:$0xff]
        %v155 = vcombine.high %v153, %v153
        %vm157 = vcmask 1043456
        %v158 = vsel %vm157, %v153, -inf
        %v159 = vrot.slane %v158, 4
        %v160 = vmax.f32 %v158, %v159
        %v161 = vrot.slane %v160, 2
        %v162 = vmax.f32 %v160, %v161
        %v163 = vrot.slane %v162, 1
        %v164 = vmax.f32 %v162, %v163
        %v165 = vsel %vm157, %v155, -inf
        %v166 = vrot.slane %v165, 4
        %v167 = vmax.f32 %v165, %v166
        %v168 = vrot.slane %v167, 2
        %v169 = vmax.f32 %v167, %v168
        %v170 = vrot.slane %v169, 1
        %v171 = vmax.f32 %v169, %v170
        %v172 = vsel %vm157, %v153, 0.0
        %v173 = vrot.slane %v172, 4
        %v174 = vadd.f32 %v172, %v173
        %v175 = vrot.slane %v174, 2
        %v176 = vadd.f32 %v174, %v175
        %v177 = vrot.slane %v176, 1
        %v178 = vadd.f32 %v176, %v177
        %v179 = vsel %vm157, %v155, 0.0
        %v180 = vrot.slane %v179, 4
        %v181 = vadd.f32 %v179, %v180
        %v182 = vrot.slane %v181, 2
        %v183 = vadd.f32 %v181, %v182
        %v184 = vrot.slane %v183, 1
        %v185 = vadd.f32 %v183, %v184
        %v186 = vmul.f32 %v178, 0.25
        %v187 = vmul.f32 %v185, 0.25
        %vm188 = vcmask 1040384
        %v189 = vsel %vm188, %v164, %v186
        %v190 = vsel %vm188, %v171, %v187
        %v193 = vcombine.low %v189, %v190
        %v195 = vunpack.c.l.s4 1983009808
        %v196 = vunpack.c.0.s8 %v195
        %v197 = vlaneseq
        %v198 = vshrl.u32 %v197, 7
        %v199 = vsub.s32 %v196, %v198
        %v200 = vrot.slane %v193, %v199
        %202 = vst [vmem:[%s150] sm:$0xf] %v200
        %s203 = sand.u32 %s68, 1
        %s204 = scalar_lea.sflag [#allocation4], %s203
        %s205 = sand.u32 %s68, 1
        %s206 = smul.addr %s205, 4
        %s207 = scalar_lea.vmem [#allocation5], %s206
        // Predicated region
        $region29: #{tpu_custom_call.1} parent=23 // pred_check
          %p208 = pneg %p78
        $region30: #{tpu_custom_call.1} parent=23 // pred_check_branch
          %210 = sbr.rel (%p208) target = $region32
        $region31: #{tpu_custom_call.1} parent=23 // pred_region
          %s211 = smul.u32 2, %s23
          %s213 = ssub.s32 64, 64
          %214 = vsyncadd %s204, %s213
          %s215 = smul.addr %s22, 2
          %s216 = sadd.s32 %s211, %s215
          %s217 = smul.addr %s216, 32
          %s218 = scalar_lea.hbm %s1, %s217
          %s220 = sshll.u32 %s207, 4
          %s221 = int_to_ptr.vmem [resolvable:$true] %s220
          %223 = dma.vmem_to_hbm [thread:$0]  %s221, 64, %s218, %s204
        $region32: #{tpu_custom_call.1} parent=23 // pred_fallthru
          _
      $region24: #{tpu_custom_call.1} parent=5 // pred_fallthru
        _
      %p224 = scmp.le.s32.totalorder 2, %s13
      // Predicated region
      $region33: #{tpu_custom_call.1} parent=5 // pred_check
        %p225 = pneg %p224
      $region34: #{tpu_custom_call.1} parent=5 // pred_check_branch
        %227 = sbr.rel (%p225) target = $region36
      $region35: #{tpu_custom_call.1} parent=5 // pred_region
        %s228 = ssub.s32 %s13, 2
        // Predicated region
        $region37: #{tpu_custom_call.1} parent=35 // pred_check
          %p229 = pneg %p84
        $region38: #{tpu_custom_call.1} parent=35 // pred_check_branch
          %231 = sbr.rel (%p229) target = $region40
        $region39: #{tpu_custom_call.1} parent=35 // pred_region
          %s232 = sand.u32 %s69, 1
          %s233 = scalar_lea.sflag [#allocation4], %s232
          %s234 = sand.u32 %s69, 1
          %s235 = smul.addr %s234, 4
          %s236 = scalar_lea.vmem [#allocation5], %s235
          %237 = dma.done %s233, 64
        $region40: #{tpu_custom_call.1} parent=35 // pred_fallthru
          _
      $region36: #{tpu_custom_call.1} parent=5 // pred_fallthru
        _
    $region6: #{tpu_custom_call.1} parent=1 // loop_footer
      %s17 = sadd.s32 1, %s13
    $region7: #{tpu_custom_call.1} parent=1 // loop_footer_branch
      %12 = sbr.rel target = $region3
    $region8: #{tpu_custom_call.1} parent=1 // loop_exit
      _
    %238 = vsyncpa [#allocation3], 1
    %s239 = scalar_lea.sflag [#allocation3], 1
    %240 = vsyncpa %s239, 1
    %241 = vsyncpa [#allocation4], 1
    %s242 = scalar_lea.sflag [#allocation4], 1
    %243 = vsyncpa %s242, 1

</llo_original>
